<compile_context>
chip_gen: v6e
topology: v6e:2x2x1
jax: 0.10.0
libtpu: 0.0.40
codegen_flags: <defaults>
</compile_context>

<pallas_src>
import functools
import math

import jax
import jax.numpy as jnp
from jax import lax
from jax.experimental import pallas as pl
from jax.experimental.pallas import tpu as pltpu

# Sublane packing multiple per element size (f32 -> 8 rows, bf16/f16 -> 16, int8 -> 32).
_SUBLANE_MULT = {4: 8, 2: 16, 1: 32}


# ----------------------------------------------------------------------------
# Layout / budget helpers (trace-time Python).
# ----------------------------------------------------------------------------
def _vmem_budget():
    """Generation-aware usable-VMEM budget (bytes) for whole-sample blocks."""
    cap = None
    try:
        cap = getattr(pltpu.get_tpu_info(), "vmem_capacity_bytes", None)
    except Exception:
        cap = None
    if not cap:
        cap = 64 << 20  # conservative: v7x per-TensorCore physical VMEM
    # Leave ~25% headroom for Mosaic scratch / semaphores / misc.
    return (int(cap) * 3) // 4  # ~48 MiB on v7x, ~96 MiB on v5e/v6e


def _padded_layout(total, mult):
    lane = 128
    for cand in (1024, 512, 256):
        if total >= cand * mult:
            lane = cand
            break
    rows = -(-total // lane)           # ceil
    rows = -(-rows // mult) * mult     # round rows up to the packing multiple
    return rows, lane, rows * lane, True


def _choose_layout(total, mult):
    """Lane-dense (rows, lane) factorization, preferring exact divisors (no pad)."""
    aligned = None
    ragged = None
    for lane in (1024, 512, 256, 128):
        if total % lane:
            continue
        rows = total // lane
        if rows % mult == 0 and aligned is None:
            aligned = (rows, lane)     # largest lane with packing-aligned rows
        ragged = (rows, lane)          # smallest lane -> most rows (best sublane use)
    if aligned is not None:
        rows, lane = aligned
        return rows, lane, total, False
    if ragged is not None:
        rows, lane = ragged
        return rows, lane, total, False
    # No 128 divisor at all (odd/tiny C*H*W): pad as a last resort.
    # TODO(synk): handle the ragged tail in-kernel (masked load/store) instead
    # of the XLA pad+slice pass for these rare shapes.
    return _padded_layout(total, mult)


def _pick_chunk(rows, lane, mult):
    """Rows per in-kernel loop iteration (None -> process the whole slab at once)."""
    for c in (64, 32, 16, 8):
        if c % mult == 0 and rows % c == 0 and c * lane <= 8192:
            return c
    return None


def _pick_row_block(rows, mult, cap_rows):
    """Largest divisor of `rows` that is a multiple of `mult` and <= cap_rows."""
    cap = min(rows, max(mult, cap_rows))
    best = None
    d = mult
    while d <= cap:
        if rows % d == 0:
            best = d
        d += mult
    return best if best is not None else rows


# ----------------------------------------------------------------------------
# Kernels.
# ----------------------------------------------------------------------------
def _instance_norm_kernel(x_ref, o_ref, *, eps, const, chunk, native_mul):
    """Single-pass kernel: whole-sample block (1, rows, lane) resident in VMEM."""
    rows, lane = x_ref.shape[1], x_ref.shape[2]

    if chunk is None or chunk >= rows:
        # Small / ragged slabs: one shot.
        blk32 = x_ref[0].astype(jnp.float32)
        factor = const * lax.rsqrt(jnp.sum(blk32 * blk32) + eps)
        if native_mul:
            o_ref[...] = x_ref[...] * factor.astype(o_ref.dtype)
        else:
            o_ref[...] = (x_ref[...].astype(jnp.float32) * factor).astype(o_ref.dtype)
        return

    nchunks = rows // chunk
    unroll = min(2, nchunks)

    # Pass 1: f32 sum-of-squares, chunked (one vreg-group live, not a full f32 copy).
    def red_body(i, acc):
        start = pl.multiple_of(i * chunk, chunk)
        blk = x_ref[0, pl.ds(start, chunk), :].astype(jnp.float32)
        return acc + blk * blk

    acc = lax.fori_loop(0, nchunks, red_body,
                        jnp.zeros((chunk, lane), jnp.float32), unroll=unroll)
    factor = const * lax.rsqrt(jnp.sum(acc) + eps)  # single EUP rsqrt per sample
    if native_mul:
        factor_native = factor.astype(o_ref.dtype)  # hoisted out of the loop

    # Pass 2: chunked scale + store (re-streams the slab from VMEM).
    def scale_body(i, carry):
        start = pl.multiple_of(i * chunk, chunk)
        blk = x_ref[0, pl.ds(start, chunk), :]
        if native_mul:
            o_ref[0, pl.ds(start, chunk), :] = blk * factor_native
        else:
            o_ref[0, pl.ds(start, chunk), :] = (
                blk.astype(jnp.float32) * factor).astype(o_ref.dtype)
        return carry

    lax.fori_loop(0, nchunks, scale_body, 0, unroll=unroll)


def _reduce_kernel(x_ref, f_ref, acc_ref, *, eps, const):
    """Two-pass path, pass 1: accumulate sum(x^2) across the row-chunk grid axis."""
    j = pl.program_id(1)

    @pl.when(j == 0)
    def _():
        acc_ref[...] = jnp.zeros_like(acc_ref)

    rc = x_ref.shape[1]
    nsub = rc // 8

    def body(k, acc):
        start = pl.multiple_of(k * 8, 8)
        blk = x_ref[0, pl.ds(start, 8), :].astype(jnp.float32)
        return acc + blk * blk

    acc_ref[...] = lax.fori_loop(0, nsub, body, acc_ref[...],
                                 unroll=min(2, nsub))

    @pl.when(j == pl.num_programs(1) - 1)
    def _():
        factor = const * lax.rsqrt(jnp.sum(acc_ref[...]) + eps)
        f_ref[...] = jnp.full(f_ref.shape, factor, dtype=jnp.float32)


def _scale_kernel(f_ref, x_ref, o_ref, *, native_mul):
    """Two-pass path, pass 2: out = x * factor."""
    factor = f_ref[0, 0, 0]
    if native_mul:
        o_ref[...] = x_ref[...] * factor.astype(o_ref.dtype)
    else:
        o_ref[...] = (x_ref[...].astype(jnp.float32) * factor).astype(o_ref.dtype)


# ----------------------------------------------------------------------------
# pallas_call wrappers.
# ----------------------------------------------------------------------------
def _single_pass_call(xf, n, rows, lane, dtype, eps, const, mult, native_mul,
                      single_need, budget, itemsize):
    chunk = _pick_chunk(rows, lane, mult)
    kernel = functools.partial(_instance_norm_kernel, eps=eps, const=const,
                               chunk=chunk, native_mul=native_mul)
    vmem_limit = int(min(max(single_need, 32 << 20), budget))
    cost = pl.CostEstimate(flops=3 * n * rows * lane, transcendentals=n,
                           bytes_accessed=2 * n * rows * lane * itemsize)
    return pl.pallas_call(
        kernel,
        out_shape=jax.ShapeDtypeStruct((n, rows, lane), dtype),
        grid_spec=pltpu.PrefetchScalarGridSpec(
            num_scalar_prefetch=0,
            grid=(n,),
            in_specs=[pl.BlockSpec((1, rows, lane), lambda i: (i, 0, 0))],
            out_specs=pl.BlockSpec((1, rows, lane), lambda i: (i, 0, 0)),
        ),
        compiler_params=pltpu.CompilerParams(
            dimension_semantics=("parallel",),
            vmem_limit_bytes=vmem_limit,
        ),
        cost_estimate=cost,
        input_output_aliases={0: 0},
    )(xf)


def _two_pass_call(xf, n, rows, lane, dtype, eps, const, mult, native_mul,
                   budget, itemsize, row_block_bytes):
    cap_rows = max(mult, row_block_bytes // (lane * itemsize))
    rc = _pick_row_block(rows, mult, cap_rows)
    nrc = rows // rc
    rc_bytes = rc * lane * itemsize

    # Pass 1: per-sample factor (broadcast into an (8,128) slab -> clean layout).
    reduce_vmem = int(min(max(2 * rc_bytes + (4 << 20), 16 << 20), budget))
    fbr = pl.pallas_call(
        functools.partial(_reduce_kernel, eps=eps, const=const),
        out_shape=jax.ShapeDtypeStruct((n, 8, 128), jnp.float32),
        grid_spec=pltpu.PrefetchScalarGridSpec(
            num_scalar_prefetch=0,
            grid=(n, nrc),
            in_specs=[pl.BlockSpec((1, rc, lane), lambda i, j: (i, j, 0))],
            out_specs=pl.BlockSpec((1, 8, 128), lambda i, j: (i, 0, 0)),
            scratch_shapes=[pltpu.VMEM((8, lane), jnp.float32)],
        ),
        compiler_params=pltpu.CompilerParams(
            dimension_semantics=("parallel", "arbitrary"),
            vmem_limit_bytes=reduce_vmem,
        ),
        cost_estimate=pl.CostEstimate(
            flops=2 * n * rows * lane, transcendentals=n,
            bytes_accessed=n * rows * lane * itemsize),
    )(xf)

    # Pass 2: scale.
    scale_vmem = int(min(max(4 * rc_bytes + (4 << 20), 16 << 20), budget))
    return pl.pallas_call(
        functools.partial(_scale_kernel, native_mul=native_mul),
        out_shape=jax.ShapeDtypeStruct((n, rows, lane), dtype),
        grid_spec=pltpu.PrefetchScalarGridSpec(
            num_scalar_prefetch=0,
            grid=(n, nrc),
            in_specs=[pl.BlockSpec((1, 8, 128), lambda i, j: (i, 0, 0)),
                      pl.BlockSpec((1, rc, lane), lambda i, j: (i, j, 0))],
            out_specs=pl.BlockSpec((1, rc, lane), lambda i, j: (i, j, 0)),
        ),
        compiler_params=pltpu.CompilerParams(
            dimension_semantics=("parallel", "parallel"),
            vmem_limit_bytes=scale_vmem,
        ),
        cost_estimate=pl.CostEstimate(
            flops=n * rows * lane, transcendentals=0,
            bytes_accessed=2 * n * rows * lane * itemsize),
        input_output_aliases={1: 0},
    )(fbr, xf)


@functools.partial(jax.jit, static_argnames=(
    "size_average", "eps", "scale", "_force_two_pass", "_row_block_bytes"))
def instance_l2_norm(x, *, size_average=True, eps=1e-5, scale=1.0,
                     _force_two_pass=False, _row_block_bytes=4 << 20):
    """Instance L2 norm over (C,H,W) per sample; x is (N, C, H, W)."""
    n, c, h, w = x.shape
    total = c * h * w
    dtype = x.dtype
    itemsize = jnp.dtype(dtype).itemsize
    mult = _SUBLANE_MULT.get(itemsize, 8)

    # Fold size_average's sqrt(CHW) into one trace-time constant:
    #   out = x * const * rsqrt(sum(x^2) + eps)
    const = float(scale) * (math.sqrt(float(total)) if size_average else 1.0)
    native_mul = (dtype == jnp.bfloat16) or (dtype == jnp.float16)
    eps = float(eps)

    budget = _vmem_budget()
    rows, lane, padded, needs_pad = _choose_layout(total, mult)
    single_need = 4 * rows * lane * itemsize + (2 << 20)  # 2x in + 2x out blocks
    use_single = (single_need <= budget) and not _force_two_pass
    if not use_single and rows % mult != 0:
        # Row-chunked fallback needs rows % sublane-packing == 0; re-layout.
        rows, lane, padded, needs_pad = _padded_layout(total, mult)

    # Lane-dense reshape (free layout plumbing; no pad/slice in the common case).
    xf = x.reshape(n, total)
    if needs_pad and padded != total:
        # Zero padding contributes 0 to the sum of squares.
        xf = jnp.pad(xf, ((0, 0), (0, padded - total)))
    xf = xf.reshape(n, rows, lane)

    if use_single:
        out = _single_pass_call(xf, n, rows, lane, dtype, eps, const, mult,
                                native_mul, single_need, budget, itemsize)
    else:
        out = _two_pass_call(xf, n, rows, lane, dtype, eps, const, mult,
                             native_mul, budget, itemsize, _row_block_bytes)

    out = out.reshape(n, padded)
    if padded != total:
        out = out[:, :total]
    return out.reshape(n, c, h, w)


def instance_l2_norm_ref(x, *, size_average=True, eps=1e-5, scale=1.0):
    """Pure-JAX reference (mirrors the PyTorch forward)."""
    n, c, h, w = x.shape
    ss = jnp.sum((x * x).reshape(n, 1, 1, -1), axis=3, keepdims=True) + eps
    if size_average:
        return x * (scale * jnp.sqrt(c * h * w / ss))
    else:
        return x * (scale / jnp.sqrt(ss))


if __name__ == "__main__":
    key = jax.random.PRNGKey(0)
    k1, k2, k3, k4 = jax.random.split(key, 4)

    # 1) Small f32 sample, size_average=True (single-pass path).
    x = jax.random.normal(k1, (2, 4, 16, 16), dtype=jnp.float32)
    out = jax.block_until_ready(instance_l2_norm(x, size_average=True, eps=1e-5, scale=1.0))
    ref = instance_l2_norm_ref(x, size_average=True, eps=1e-5, scale=1.0)
    assert out.shape == ref.shape and out.dtype == ref.dtype
    assert jnp.allclose(out, ref, atol=1e-5, rtol=1e-4), "mismatch (size_average=True)"

    # 2) size_average=False path (with a non-unit scale).
    out = jax.block_until_ready(instance_l2_norm(x, size_average=False, eps=1e-5, scale=2.0))
    ref = instance_l2_norm_ref(x, size_average=False, eps=1e-5, scale=2.0)
    assert jnp.allclose(out, ref, atol=1e-5, rtol=1e-4), "mismatch (size_average=False)"

    # 3) Larger f32 sample exercising the in-kernel chunked reduce/scale loops.
    x3 = jax.random.normal(k2, (2, 32, 32, 32), dtype=jnp.float32)
    out = jax.block_until_ready(instance_l2_norm(x3))
    ref = instance_l2_norm_ref(x3)
    assert jnp.allclose(out, ref, atol=1e-5, rtol=1e-4), "mismatch (chunked single-pass)"

    # 4) Forced chunked two-pass (reduce + scale) fallback used for big slabs on v7x.
    x4 = jax.random.normal(k3, (2, 16, 32, 32), dtype=jnp.float32)
    out = jax.block_until_ready(
        instance_l2_norm(x4, _force_two_pass=True, _row_block_bytes=4096))
    ref = instance_l2_norm_ref(x4)
    assert jnp.allclose(out, ref, atol=1e-5, rtol=1e-4), "mismatch (two-pass fallback)"

    # 5) bf16 input: f32 accumulation + native-dtype scale pass.
    x5 = jax.random.normal(k4, (2, 16, 16, 16), dtype=jnp.bfloat16)
    out = jax.block_until_ready(instance_l2_norm(x5))
    assert out.dtype == jnp.bfloat16
    ref = instance_l2_norm_ref(x5.astype(jnp.float32))
    assert jnp.allclose(out.astype(jnp.float32), ref, atol=3e-2, rtol=3e-2), "mismatch (bf16)"

    print("KERNEL_OK")
</pallas_src>

<mosaic_0001>
module attributes {stable_mosaic.version = 11 : i64} {
  func.func @_instance_norm_kernel(%arg0: i32, %arg1: memref<1x8x128xf32, #tpu.memory_space<vmem>>, %arg2: memref<1x8x128xf32, #tpu.memory_space<vmem>>) attributes {dimension_semantics = [#tpu.dimension_semantics<parallel>], iteration_bounds = array<i64: 2>, scalar_prefetch = 0 : i64, scratch_operands = 0 : i64, tpu.core_type = #tpu.core_type<tc>, window_params = [{transform_indices = @transform_0, window_bounds = array<i64: 1, 8, 128>}, {transform_indices = @transform_1, window_bounds = array<i64: 1, 8, 128>}]} {
    %c0 = arith.constant 0 : index
    %c0_0 = arith.constant 0 : index
    %c0_1 = arith.constant 0 : index
    %0 = vector.load %arg1[%c0, %c0_0, %c0_1] : memref<1x8x128xf32, #tpu.memory_space<vmem>>, vector<1x8x128xf32>
    %1 = vector.shape_cast %0 : vector<1x8x128xf32> to vector<8x128xf32>
    %2 = arith.mulf %1, %1 : vector<8x128xf32>
    %3 = vector.shape_cast %2 : vector<8x128xf32> to vector<1x8x128xf32>
    %cst = arith.constant dense<0.000000e+00> : vector<1xf32>
    %4 = vector.multi_reduction <add>, %3, %cst [1, 2] : vector<1x8x128xf32> to vector<1xf32>
    %5 = vector.shape_cast %4 : vector<1xf32> to vector<1x1x1xf32>
    %6 = vector.extract %5[0, 0, 0] : f32 from vector<1x1x1xf32>
    %cst_2 = arith.constant 9.99999974E-6 : f32
    %7 = arith.addf %6, %cst_2 : f32
    %8 = math.rsqrt %7 : f32
    %cst_3 = arith.constant 3.200000e+01 : f32
    %9 = arith.mulf %cst_3, %8 : f32
    %c0_4 = arith.constant 0 : index
    %c0_5 = arith.constant 0 : index
    %c0_6 = arith.constant 0 : index
    %10 = vector.load %arg1[%c0_4, %c0_5, %c0_6] : memref<1x8x128xf32, #tpu.memory_space<vmem>>, vector<1x8x128xf32>
    %11 = vector.broadcast %9 : f32 to vector<1x8x128xf32>
    %12 = arith.mulf %10, %11 : vector<1x8x128xf32>
    %c0_7 = arith.constant 0 : index
    %c0_8 = arith.constant 0 : index
    %c0_9 = arith.constant 0 : index
    %13 = vector.load %arg2[%c0_7, %c0_8, %c0_9] : memref<1x8x128xf32, #tpu.memory_space<vmem>>, vector<1x8x128xf32>
    tpu.vector_store %arg2[%c0_7, %c0_8, %c0_9], %12 {strides = array<i32>} : memref<1x8x128xf32, #tpu.memory_space<vmem>>, vector<1x8x128xf32>,
    return
  }
  func.func @transform_0(%arg0: i32) -> (i32, i32, i32) {
    %c0_i32 = arith.constant 0 : i32
    %c0_i32_0 = arith.constant 0 : i32
    %c0_i32_1 = arith.constant 0 : i32
    return %arg0, %c0_i32, %c0_i32_0 : i32, i32, i32
  }
  func.func @transform_1(%arg0: i32) -> (i32, i32, i32) {
    %c0_i32 = arith.constant 0 : i32
    %c0_i32_0 = arith.constant 0 : i32
    %c0_i32_1 = arith.constant 0 : i32
    return %arg0, %c0_i32, %c0_i32_0 : i32, i32, i32
  }
}

</mosaic_0001>

<llo_original>
// kernel: instance_l2_norm.1
$region0: #{instance_l2_norm.1}
  #allocation0 [shape = 'u32[]', space=smem, size = 0x4, offset = 0x4, fixed_abs, tag = 'smem constant byte address 0x4 - core index']
  #allocation1 [shape = 'u32[144,128]{1,0:T(1,128)}', space=vmem, size = 0x12000, scoped, tag = 'internal scratch']
  %s0 = inlined_call_operand.vmem [shape: f32[2,8,128], index: 0, kind: input, shape index: {}, may-alias: {0,1}]
  %s1 = inlined_call_operand.vmem [shape: f32[2,8,128], index: 1, kind: output, shape index: {}, may-alias: {0,1}]
  %s2 = sld [smem:[#allocation0]]
  $region37: #{instance_l2_norm.1} parent=0
    _
  %s4 = ssub.s32 1, %s2
  %s5 = scalar_select 0, %s4, %s2
  loop: start=0, step=1, limit=4
  $region2: #{instance_l2_norm.1} parent=0 // loop_pre_header
    _
  $region3: #{instance_l2_norm.1} parent=0 // loop_header
    %s7 = sphi 0, %s11
    %p8 = scmp.ge.s32.totalorder %s7, 4
    %s17 = sphi 0, %s19
    %s20 = sphi 0, %s17
    %s21 = sphi 0, %s20
    %s37 = sphi 0, %s21
    %s43 = sphi 0, %s45
    %s46 = sphi 0, %s43
    %s47 = sphi 0, %s46
    %s63 = sphi 0, %s47
  $region4: #{instance_l2_norm.1} parent=0 // loop_header_branch
    %10 = sbr.rel (%p8) target = $region8
  $region5: #{instance_l2_norm.1} parent=0 // loop_body
    %s12 = ssub.s32 %s7, 1
    %s13 = ssub.s32 %s7, 2
    %s14 = sadd.s32 %s7, 1
    %s15 = ssub.s32 %s7, %s14
    %p16 = scmp.eq.s32.totalorder %s15, 0
    %s18 = sadd.s32 %s17, 1
    %s19 = scalar_select %p16, %s17, %s18
    %p22 = pneg %p16
    %p23 = scmp.eq.s32.totalorder %s7, 1
    %p24 = por %p22, %p23
    %p25 = scmp.ne.s32.totalorder %s17, %s20
    %p26 = scmp.eq.s32.totalorder %s7, 0
    %p27 = por %p25, %p26
    %p28 = scmp.ne.s32.totalorder %s17, %s20
    %p29 = scmp.eq.s32.totalorder %s12, 1
    %p30 = por %p28, %p29
    %p31 = scmp.ne.s32.totalorder %s20, %s21
    %p32 = scmp.eq.s32.totalorder %s12, 0
    %p33 = por %p31, %p32
    %p34 = scmp.ne.s32.totalorder %s20, %s21
    %p35 = scmp.eq.s32.totalorder %s13, 1
    %p36 = por %p34, %p35
    %p38 = scmp.ne.s32.totalorder %s21, %s37
    %p39 = scmp.eq.s32.totalorder %s13, 0
    %p40 = por %p38, %p39
    %s41 = ssub.s32 %s7, %s14
    %p42 = scmp.eq.s32.totalorder %s41, 0
    %s44 = sadd.s32 %s43, 1
    %s45 = scalar_select %p42, %s43, %s44
    %p48 = pneg %p42
    %p49 = scmp.eq.s32.totalorder %s7, 1
    %p50 = por %p48, %p49
    %p51 = scmp.ne.s32.totalorder %s43, %s46
    %p52 = scmp.eq.s32.totalorder %s7, 0
    %p53 = por %p51, %p52
    %p54 = scmp.ne.s32.totalorder %s43, %s46
    %p55 = scmp.eq.s32.totalorder %s12, 1
    %p56 = por %p54, %p55
    %p57 = scmp.ne.s32.totalorder %s46, %s47
    %p58 = scmp.eq.s32.totalorder %s12, 0
    %p59 = por %p57, %p58
    %p60 = scmp.ne.s32.totalorder %s46, %s47
    %p61 = scmp.eq.s32.totalorder %s13, 1
    %p62 = por %p60, %p61
    %p64 = scmp.ne.s32.totalorder %s47, %s63
    %p65 = scmp.eq.s32.totalorder %s13, 0
    %p66 = por %p64, %p65
    %p67 = scmp.le.s32.totalorder 1, %s7
    %p68 = scmp.lt.s32.totalorder %s7, 3
    %p69 = pnand %p67, %p68
    %p70 = pneg %p69
    // Predicated region
    $region9: #{instance_l2_norm.1} parent=5 // pred_check
      _
    $region10: #{instance_l2_norm.1} parent=5 // pred_check_branch
      %72 = sbr.rel (%p69) target = $region12
    $region11: #{instance_l2_norm.1} parent=5 // pred_region
      %s73 = ssub.s32 %s7, 1
    $region12: #{instance_l2_norm.1} parent=5 // pred_fallthru
      _
    %p74 = scmp.lt.s32.totalorder %s7, 2
    // Predicated region
    $region13: #{instance_l2_norm.1} parent=5 // pred_check
      %p75 = pneg %p74
    $region14: #{instance_l2_norm.1} parent=5 // pred_check_branch
      %77 = sbr.rel (%p75) target = $region16
    $region15: #{instance_l2_norm.1} parent=5 // pred_region
      // Predicated region
      $region17: #{instance_l2_norm.1} parent=15 // pred_check
        %p78 = pneg %p27
      $region18: #{instance_l2_norm.1} parent=15 // pred_check_branch
        %80 = sbr.rel (%p78) target = $region20
      $region19: #{instance_l2_norm.1} parent=15 // pred_region
        %p81 = scmp.lt.s32.totalorder %s7, 1
        %s82 = scalar_select %p81, %s7, 1
        %s83 = smul.addr %s82, 8
        %s84 = scalar_lea.vmem %s0, %s83
      $region20: #{instance_l2_norm.1} parent=15 // pred_fallthru
        _
    $region16: #{instance_l2_norm.1} parent=5 // pred_fallthru
      _
    %p85 = scmp.le.s32.totalorder 1, %s7
    %p86 = scmp.lt.s32.totalorder %s7, 3
    %p87 = pnand %p85, %p86
    %p88 = pneg %p87
    // Predicated region
    $region21: #{instance_l2_norm.1} parent=5 // pred_check
      _
    $region22: #{instance_l2_norm.1} parent=5 // pred_check_branch
      %90 = sbr.rel (%p87) target = $region24
    $region23: #{instance_l2_norm.1} parent=5 // pred_region
      %s91 = ssub.s32 %s7, 1
      %p92 = scmp.lt.s32.totalorder %s12, 1
      %s93 = scalar_select %p92, %s12, 1
      %s94 = smul.addr %s93, 8
      %s95 = scalar_lea.vmem %s0, %s94
      %p96 = pneg %p33
      %p97 = pneg %p30
      %p98 = pneg %p59
      %p99 = pneg %p56
      %p100 = scmp.lt.s32.totalorder %s12, 1
      %s101 = scalar_select %p100, %s12, 1
      %s102 = smul.addr %s101, 8
      %s103 = scalar_lea.vmem %s1, %s102
      %p104 = scmp.lt.s32.totalorder %s12, 1
      %s105 = scalar_select %p104, %s12, 1
      %s106 = smul.addr %s105, 8
      %s107 = scalar_lea.vmem %s0, %s106
      %p108 = scmp.lt.s32.totalorder %s12, 1
      %s109 = scalar_select %p108, %s12, 1
      %s110 = smul.addr %s109, 8
      %s111 = scalar_lea.vmem %s1, %s110
      %v112 = vld [vmem:[%s107] sm:$0xff]
      %v113 = vmul.f32 %v112, %v112
      %114 = vadd.xlane.f32.xlu0 %v113
      %v115 = vpop.xlane.xlu0 %114
      %v116 = vrot.slane %v115, 4
      %v117 = vadd.f32 %v115, %v116
      %v118 = vrot.slane %v117, 2
      %v119 = vadd.f32 %v117, %v118
      %v120 = vrot.slane %v119, 1
      %v121 = vadd.f32 %v119, %v120
      %s122 = vtos %v121
      %s123 = sadd.f32 %s122, 1e-05
      %v124 = vstv %s123
      %v125 = vrsqrt.pop %v124
      %s126 = vtos %v125
      %s127 = smul.f32 %s126, 32.0
      %v128 = vstv %s127
      %v129 = vmul.f32 %v112, %v128
      %130 = vst [vmem:[%s111] sm:$0xff] %v129
      %p131 = scmp.lt.s32.totalorder %s12, 1
      %s132 = scalar_select %p131, %s12, 1
      %s133 = smul.addr %s132, 8
      %s134 = scalar_lea.vmem %s1, %s133
      // Predicated region
      $region25: #{instance_l2_norm.1} parent=23 // pred_check
        %p135 = pneg %p56
      $region26: #{instance_l2_norm.1} parent=23 // pred_check_branch
        %137 = sbr.rel (%p135) target = $region28
      $region27: #{instance_l2_norm.1} parent=23 // pred_region
        _
      $region28: #{instance_l2_norm.1} parent=23 // pred_fallthru
        _
    $region24: #{instance_l2_norm.1} parent=5 // pred_fallthru
      _
    %p138 = scmp.le.s32.totalorder 2, %s7
    // Predicated region
    $region29: #{instance_l2_norm.1} parent=5 // pred_check
      %p139 = pneg %p138
    $region30: #{instance_l2_norm.1} parent=5 // pred_check_branch
      %141 = sbr.rel (%p139) target = $region32
    $region31: #{instance_l2_norm.1} parent=5 // pred_region
      %s142 = ssub.s32 %s7, 2
      // Predicated region
      $region33: #{instance_l2_norm.1} parent=31 // pred_check
        %p143 = pneg %p62
      $region34: #{instance_l2_norm.1} parent=31 // pred_check_branch
        %145 = sbr.rel (%p143) target = $region36
      $region35: #{instance_l2_norm.1} parent=31 // pred_region
        %p146 = scmp.lt.s32.totalorder %s13, 1
        %s147 = scalar_select %p146, %s13, 1
        %s148 = smul.addr %s147, 8
        %s149 = scalar_lea.vmem %s1, %s148
      $region36: #{instance_l2_norm.1} parent=31 // pred_fallthru
        _
    $region32: #{instance_l2_norm.1} parent=5 // pred_fallthru
      _
  $region6: #{instance_l2_norm.1} parent=0 // loop_footer
    %s11 = sadd.s32 1, %s7
  $region7: #{instance_l2_norm.1} parent=0 // loop_footer_branch
    %6 = sbr.rel target = $region3
  $region8: #{instance_l2_norm.1} parent=0 // loop_exit
    _

</llo_original>
